<compile_context>
chip_gen: v6e
topology: v6e:2x2x1
jax: 0.10.0
libtpu: 0.0.40
codegen_flags: <defaults>
</compile_context>

<pallas_src>
import jax
import jax.numpy as jnp
from jax import lax
from jax.experimental import pallas as pl
from jax.experimental.pallas import tpu as pltpu

BN_EPS = 1e-5


def _round_up(x, m):
    return (x + m - 1) // m * m


def _make_fused_kernel(N, Cout8, count):
    """Fused upsample+conv (pixel-shuffle form) + batch-stats + BN + ReLU kernel."""
    P = 4  # 2x2 output parities

    def kernel(xT_ref, w_ref, gamma_ref, beta_ref, out_ref, s_ref, q_ref):
        # xT_ref:    (1, 9*Cin, HW0)   bf16  transposed 9-tap im2col of one batch element
        # w_ref:     (4*Cout8, 9*Cin)  bf16  folded weights, rows = (parity, out-channel)
        # gamma_ref: (Cout8, 1) f32, beta_ref: (Cout8, 1) f32
        # out_ref:   (N, 4*Cout8, HW0) f32   VMEM-resident across the whole grid
        # s_ref/q_ref: (4*Cout8, 1) f32 scratch: running sum / sum of squares
        n = pl.program_id(0)

        @pl.when(n == 0)
        def _init():
            s_ref[...] = jnp.zeros_like(s_ref)
            q_ref[...] = jnp.zeros_like(q_ref)

        # Single MXU matmul per batch element: channels(+parity) on sublanes,
        # flattened spatial positions on lanes -> lane-dense stores.
        y = jnp.dot(w_ref[...], xT_ref[0], preferred_element_type=jnp.float32)
        out_ref[n] = y                                     # pre-BN conv, stays in VMEM
        s_ref[...] += jnp.sum(y, axis=1, keepdims=True)    # XLU lane reductions
        q_ref[...] += jnp.sum(y * y, axis=1, keepdims=True)

        @pl.when(n == N - 1)
        def _finalize():
            s = s_ref[...]
            q = q_ref[...]
            # Combine the four parity blocks -> per-channel batch statistics.
            s_c = s[0:Cout8]
            q_c = q[0:Cout8]
            for p in range(1, P):
                s_c = s_c + s[p * Cout8:(p + 1) * Cout8]
                q_c = q_c + q[p * Cout8:(p + 1) * Cout8]
            mean = s_c / count
            var = jnp.maximum(q_c / count - mean * mean, 0.0)   # biased var (train mode)
            scale = gamma_ref[...] * lax.rsqrt(var + BN_EPS)    # (Cout8, 1)
            shift = beta_ref[...] - mean * scale
            scale_t = jnp.concatenate([scale] * P, axis=0)      # (4*Cout8, 1)
            shift_t = jnp.concatenate([shift] * P, axis=0)
            # Normalize + ReLU in place on the VMEM-resident conv outputs; the single
            # HBM writeback of out_ref happens after this step.
            for m in range(N):
                out_ref[m] = jnp.maximum(out_ref[m] * scale_t + shift_t, 0.0)

    return kernel


def up_conv_forward(x_nchw, conv_bias_unused, w_oihw=None, *args):
    raise NotImplementedError  # placeholder to avoid accidental misuse (real fn below)


def up_conv_forward(x_nchw, w_oihw, conv_bias, gamma, beta):  # noqa: F811
    """Forward of up_conv. x: (N, Cin, H0, W0) f32 -> (N, Cout, 2H0, 2W0) f32.

    NOTE: the Conv2d bias is accepted for API parity but not applied — training-mode
    BatchNorm subtracts the per-channel batch mean immediately afterwards, so a
    per-channel constant added before BN cancels exactly (and only hurts the
    sum-of-squares variance numerics).
    """
    del conv_bias
    N, Cin, H0, W0 = x_nchw.shape
    Cout = w_oihw.shape[0]
    H, W = 2 * H0, 2 * W0
    HW0 = H0 * W0
    Cout8 = _round_up(Cout, 8)
    K9 = 9 * Cin

    # Fused VMEM-resident path is sized for small feature maps (resident pre-BN block).
    # TODO(synk): add a spatial row-block grid axis (1-row halo) + streaming BN for large
    # H0*W0 / N so the resident block stays under ~24 MiB on v7x (64 MiB VMEM).
    assert N * 4 * Cout8 * HW0 * 4 <= 24 * 1024 * 1024, "input too large for fused path"

    # ---- input glue (tiny, original resolution only): transposed 9-tap im2col, bf16 ----
    x_nhwc = jnp.transpose(x_nchw, (0, 2, 3, 1))                   # (N, H0, W0, Cin)
    x_pad = jnp.pad(x_nhwc, ((0, 0), (1, 1), (1, 1), (0, 0)))      # (N, H0+2, W0+2, Cin)
    taps = jnp.stack(
        [x_pad[:, ky:ky + H0, kx:kx + W0, :] for ky in range(3) for kx in range(3)],
        axis=1)                                                    # (N, 9, H0, W0, Cin)
    im2col_t = taps.transpose(0, 1, 4, 2, 3).reshape(N, K9, HW0).astype(jnp.bfloat16)
    # TODO(synk): for large Cin build the im2col inside the kernel instead of
    # materializing the 9x-expanded bf16 input in HBM.

    # ---- fold the 3x3 conv on the 2x-upsampled image into 4 parity 2x2 convs ----
    # G[p, k, d] = 1 iff 3x3 tap d of output parity p reads original-resolution offset k.
    G = jnp.array([[[1., 0., 0.], [0., 1., 1.], [0., 0., 0.]],
                   [[0., 0., 0.], [1., 1., 0.], [0., 0., 1.]]], dtype=jnp.float32)
    wf = jnp.einsum('pyd,qxe,ocde->pqoyxc', G, G, w_oihw)          # (2,2,Cout,3,3,Cin)
    wf = jnp.pad(wf, ((0, 0), (0, 0), (0, Cout8 - Cout), (0, 0), (0, 0), (0, 0)))
    w_fold_t = wf.reshape(4 * Cout8, K9).astype(jnp.bfloat16)      # rows: (parity, chan)

    gamma_c = jnp.pad(gamma, (0, Cout8 - Cout)).reshape(Cout8, 1).astype(jnp.float32)
    beta_c = jnp.pad(beta, (0, Cout8 - Cout)).reshape(Cout8, 1).astype(jnp.float32)

    count = float(N * H * W)
    kernel = _make_fused_kernel(N, Cout8, count)

    raw = pl.pallas_call(
        kernel,
        out_shape=jax.ShapeDtypeStruct((N, 4 * Cout8, HW0), jnp.float32),
        grid_spec=pltpu.PrefetchScalarGridSpec(
            num_scalar_prefetch=0,
            grid=(N,),
            in_specs=[
                pl.BlockSpec((1, K9, HW0), lambda n: (n, 0, 0)),
                pl.BlockSpec((4 * Cout8, K9), lambda n: (0, 0)),
                pl.BlockSpec((Cout8, 1), lambda n: (0, 0)),
                pl.BlockSpec((Cout8, 1), lambda n: (0, 0)),
            ],
            # Constant block index => output stays VMEM-resident across the grid and is
            # written back to HBM exactly once, after the BN+ReLU finalize.
            out_specs=pl.BlockSpec((N, 4 * Cout8, HW0), lambda n: (0, 0, 0)),
            scratch_shapes=[pltpu.VMEM((4 * Cout8, 1), jnp.float32),
                            pltpu.VMEM((4 * Cout8, 1), jnp.float32)],
        ),
        compiler_params=pltpu.CompilerParams(
            # Global BN statistics force sequential accumulation over the batch axis.
            dimension_semantics=("arbitrary",)),
    )(im2col_t, w_fold_t, gamma_c, beta_c)

    # ---- output glue: drop channel padding and de-interleave the 2x2 parities ----
    # raw[n, (pi*2+pj)*Cout8 + c, a*W0 + b] is output pixel (2a+pi, 2b+pj) of channel c.
    out = raw.reshape(N, 2, 2, Cout8, H0, W0)[:, :, :, :Cout]      # (n, pi, pj, c, a, b)
    out = out.transpose(0, 3, 4, 1, 5, 2).reshape(N, Cout, H, W)   # (n, c, a, pi, b, pj)
    # TODO(synk): this de-interleave is one XLA pass over the UNPADDED output; fold it
    # into the kernel with stride-2 stores if it ever shows up in profiles.
    return out


def up_conv_reference(x_nchw, w_oihw, bias, gamma, beta):
    """Pure-JAX f32 reference (mirrors PyTorch training-mode forward, incl. conv bias)."""
    x_up = jnp.repeat(jnp.repeat(x_nchw, 2, axis=2), 2, axis=3)
    y = lax.conv_general_dilated(
        x_up, w_oihw, window_strides=(1, 1), padding=((1, 1), (1, 1)),
        dimension_numbers=("NCHW", "OIHW", "NCHW"),
    ) + bias[None, :, None, None]
    mean = jnp.mean(y, axis=(0, 2, 3), keepdims=True)
    var = jnp.mean((y - mean) ** 2, axis=(0, 2, 3), keepdims=True)
    y_hat = (y - mean) * lax.rsqrt(var + BN_EPS)
    return jnp.maximum(
        y_hat * gamma[None, :, None, None] + beta[None, :, None, None], 0.0
    )


if __name__ == "__main__":
    # Small shapes consistent with the module: N=2, ch_in=4, ch_out=8, spatial 16 -> 32
    N, Cin, Cout, H0, W0 = 2, 4, 8, 16, 16

    key = jax.random.PRNGKey(0)
    kx, kw, kb, kg, kbeta = jax.random.split(key, 5)
    x = jax.random.normal(kx, (N, Cin, H0, W0), dtype=jnp.float32)
    w = jax.random.normal(kw, (Cout, Cin, 3, 3), dtype=jnp.float32) * 0.2   # Conv2d weight
    b = jax.random.normal(kb, (Cout,), dtype=jnp.float32) * 0.1             # Conv2d bias
    gamma = 1.0 + 0.1 * jax.random.normal(kg, (Cout,), dtype=jnp.float32)   # BN weight
    beta = 0.1 * jax.random.normal(kbeta, (Cout,), dtype=jnp.float32)       # BN bias

    fwd = jax.jit(up_conv_forward)
    out = jax.block_until_ready(fwd(x, w, b, gamma, beta))
    assert out.shape == (N, Cout, 2 * H0, 2 * W0), out.shape

    ref = jax.block_until_ready(up_conv_reference(x, w, b, gamma, beta))
    # tolerance accounts for bf16 matmul operands (f32 accumulation).
    if not jnp.allclose(out, ref, rtol=2e-2, atol=2e-2):
        raise AssertionError(
            f"mismatch vs reference: max abs err = {jnp.max(jnp.abs(out - ref))}"
        )

    print("KERNEL_OK")
</pallas_src>

<mosaic_0001>
module attributes {stable_mosaic.version = 11 : i64} {
  func.func @kernel(%arg0: i32, %arg1: memref<1x36x256xbf16, #tpu.memory_space<vmem>>, %arg2: memref<32x36xbf16, #tpu.memory_space<vmem>>, %arg3: memref<8x1xf32, #tpu.memory_space<vmem>>, %arg4: memref<8x1xf32, #tpu.memory_space<vmem>>, %arg5: memref<2x32x256xf32, #tpu.memory_space<vmem>>, %arg6: memref<32x1xf32, #tpu.memory_space<vmem>>, %arg7: memref<32x1xf32, #tpu.memory_space<vmem>>) attributes {dimension_semantics = [#tpu.dimension_semantics<arbitrary>], iteration_bounds = array<i64: 2>, scalar_prefetch = 0 : i64, scratch_operands = 2 : i64, tpu.core_type = #tpu.core_type<tc>, window_params = [{transform_indices = @transform_0, window_bounds = array<i64: 1, 36, 256>}, {pipeline_mode = #tpu.pipeline_mode<synchronous>, transform_indices = @transform_1, window_bounds = array<i64: 32, 36>}, {pipeline_mode = #tpu.pipeline_mode<synchronous>, transform_indices = @transform_2, window_bounds = array<i64: 8, 1>}, {pipeline_mode = #tpu.pipeline_mode<synchronous>, transform_indices = @transform_3, window_bounds = array<i64: 8, 1>}, {pipeline_mode = #tpu.pipeline_mode<synchronous>, transform_indices = @transform_4, window_bounds = array<i64: 2, 32, 256>}]} {
    %c0_i32 = arith.constant 0 : i32
    %0 = arith.cmpi eq, %arg0, %c0_i32 : i32
    %1 = arith.extui %0 : i1 to i32
    %c0_i32_0 = arith.constant 0 : i32
    %2 = arith.cmpi ne, %1, %c0_i32_0 : i32
    scf.if %2 {
      %cst_18 = arith.constant 0.000000e+00 : f32
      %25 = vector.broadcast %cst_18 : f32 to vector<32x1xf32>
      %c0_19 = arith.constant 0 : index
      %c0_20 = arith.constant 0 : index
      %26 = vector.load %arg6[%c0_19, %c0_20] : memref<32x1xf32, #tpu.memory_space<vmem>>, vector<32x1xf32>
      tpu.vector_store %arg6[%c0_19, %c0_20], %25 {strides = array<i32>} : memref<32x1xf32, #tpu.memory_space<vmem>>, vector<32x1xf32>,
      %cst_21 = arith.constant 0.000000e+00 : f32
      %27 = vector.broadcast %cst_21 : f32 to vector<32x1xf32>
      %c0_22 = arith.constant 0 : index
      %c0_23 = arith.constant 0 : index
      %28 = vector.load %arg7[%c0_22, %c0_23] : memref<32x1xf32, #tpu.memory_space<vmem>>, vector<32x1xf32>
      tpu.vector_store %arg7[%c0_22, %c0_23], %27 {strides = array<i32>} : memref<32x1xf32, #tpu.memory_space<vmem>>, vector<32x1xf32>,
    } else {
    }
    %c0 = arith.constant 0 : index
    %c0_1 = arith.constant 0 : index
    %3 = vector.load %arg2[%c0, %c0_1] : memref<32x36xbf16, #tpu.memory_space<vmem>>, vector<32x36xbf16>
    %c0_2 = arith.constant 0 : index
    %c0_3 = arith.constant 0 : index
    %c0_4 = arith.constant 0 : index
    %4 = vector.load %arg1[%c0_2, %c0_3, %c0_4] : memref<1x36x256xbf16, #tpu.memory_space<vmem>>, vector<1x36x256xbf16>
    %5 = vector.shape_cast %4 : vector<1x36x256xbf16> to vector<36x256xbf16>
    %cst = arith.constant dense<0.000000e+00> : vector<32x256xf32>
    %6 = tpu.matmul %3, %5, %cst {dimension_numbers = #tpu.dot_dimension_numbers<[1], [0], [0], [1], [0, 0, 1, 1], [], []>} : vector<32x36xbf16>, vector<36x256xbf16>, vector<32x256xf32> -> vector<32x256xf32>
    %7 = arith.index_cast %arg0 : i32 to index
    %c0_5 = arith.constant 0 : index
    %c0_6 = arith.constant 0 : index
    %8 = vector.load %arg5[%7, %c0_5, %c0_6] : memref<2x32x256xf32, #tpu.memory_space<vmem>>, vector<1x32x256xf32>
    %9 = vector.shape_cast %8 : vector<1x32x256xf32> to vector<32x256xf32>
    %10 = vector.shape_cast %6 : vector<32x256xf32> to vector<1x32x256xf32>
    tpu.vector_store %arg5[%7, %c0_5, %c0_6], %10 {strides = array<i32>} : memref<2x32x256xf32, #tpu.memory_space<vmem>>, vector<1x32x256xf32>,
    %c0_7 = arith.constant 0 : index
    %c0_8 = arith.constant 0 : index
    %11 = vector.load %arg6[%c0_7, %c0_8] : memref<32x1xf32, #tpu.memory_space<vmem>>, vector<32x1xf32>
    %cst_9 = arith.constant dense<0.000000e+00> : vector<32xf32>
    %12 = vector.multi_reduction <add>, %6, %cst_9 [1] : vector<32x256xf32> to vector<32xf32>
    %13 = vector.shape_cast %12 : vector<32xf32> to vector<32x1xf32>
    %14 = arith.addf %11, %13 : vector<32x1xf32>
    %c0_10 = arith.constant 0 : index
    %c0_11 = arith.constant 0 : index
    %15 = vector.load %arg6[%c0_10, %c0_11] : memref<32x1xf32, #tpu.memory_space<vmem>>, vector<32x1xf32>
    tpu.vector_store %arg6[%c0_10, %c0_11], %14 {strides = array<i32>} : memref<32x1xf32, #tpu.memory_space<vmem>>, vector<32x1xf32>,
    %c0_12 = arith.constant 0 : index
    %c0_13 = arith.constant 0 : index
    %16 = vector.load %arg7[%c0_12, %c0_13] : memref<32x1xf32, #tpu.memory_space<vmem>>, vector<32x1xf32>
    %17 = arith.mulf %6, %6 : vector<32x256xf32>
    %cst_14 = arith.constant dense<0.000000e+00> : vector<32xf32>
    %18 = vector.multi_reduction <add>, %17, %cst_14 [1] : vector<32x256xf32> to vector<32xf32>
    %19 = vector.shape_cast %18 : vector<32xf32> to vector<32x1xf32>
    %20 = arith.addf %16, %19 : vector<32x1xf32>
    %c0_15 = arith.constant 0 : index
    %c0_16 = arith.constant 0 : index
    %21 = vector.load %arg7[%c0_15, %c0_16] : memref<32x1xf32, #tpu.memory_space<vmem>>, vector<32x1xf32>
    tpu.vector_store %arg7[%c0_15, %c0_16], %20 {strides = array<i32>} : memref<32x1xf32, #tpu.memory_space<vmem>>, vector<32x1xf32>,
    %c1_i32 = arith.constant 1 : i32
    %22 = arith.cmpi eq, %arg0, %c1_i32 : i32
    %23 = arith.extui %22 : i1 to i32
    %c0_i32_17 = arith.constant 0 : i32
    %24 = arith.cmpi ne, %23, %c0_i32_17 : i32
    scf.if %24 {
      %c0_18 = arith.constant 0 : index
      %c0_19 = arith.constant 0 : index
      %25 = vector.load %arg6[%c0_18, %c0_19] : memref<32x1xf32, #tpu.memory_space<vmem>>, vector<32x1xf32>
      %c0_20 = arith.constant 0 : index
      %c0_21 = arith.constant 0 : index
      %26 = vector.load %arg7[%c0_20, %c0_21] : memref<32x1xf32, #tpu.memory_space<vmem>>, vector<32x1xf32>
      %27 = vector.extract_strided_slice %25 {offsets = [0, 0], sizes = [8, 1], strides = [1, 1]} : vector<32x1xf32> to vector<8x1xf32>
      %28 = vector.extract_strided_slice %26 {offsets = [0, 0], sizes = [8, 1], strides = [1, 1]} : vector<32x1xf32> to vector<8x1xf32>
      %29 = vector.extract_strided_slice %25 {offsets = [8, 0], sizes = [8, 1], strides = [1, 1]} : vector<32x1xf32> to vector<8x1xf32>
      %30 = arith.addf %27, %29 : vector<8x1xf32>
      %31 = vector.extract_strided_slice %26 {offsets = [8, 0], sizes = [8, 1], strides = [1, 1]} : vector<32x1xf32> to vector<8x1xf32>
      %32 = arith.addf %28, %31 : vector<8x1xf32>
      %33 = vector.extract_strided_slice %25 {offsets = [16, 0], sizes = [8, 1], strides = [1, 1]} : vector<32x1xf32> to vector<8x1xf32>
      %34 = arith.addf %30, %33 : vector<8x1xf32>
      %35 = vector.extract_strided_slice %26 {offsets = [16, 0], sizes = [8, 1], strides = [1, 1]} : vector<32x1xf32> to vector<8x1xf32>
      %36 = arith.addf %32, %35 : vector<8x1xf32>
      %37 = vector.extract_strided_slice %25 {offsets = [24, 0], sizes = [8, 1], strides = [1, 1]} : vector<32x1xf32> to vector<8x1xf32>
      %38 = arith.addf %34, %37 : vector<8x1xf32>
      %39 = vector.extract_strided_slice %26 {offsets = [24, 0], sizes = [8, 1], strides = [1, 1]} : vector<32x1xf32> to vector<8x1xf32>
      %40 = arith.addf %36, %39 : vector<8x1xf32>
      %cst_22 = arith.constant 2.048000e+03 : f32
      %41 = vector.broadcast %cst_22 : f32 to vector<8x1xf32>
      %42 = arith.divf %38, %41 : vector<8x1xf32>
      %cst_23 = arith.constant 2.048000e+03 : f32
      %43 = vector.broadcast %cst_23 : f32 to vector<8x1xf32>
      %44 = arith.divf %40, %43 : vector<8x1xf32>
      %45 = arith.mulf %42, %42 : vector<8x1xf32>
      %46 = arith.subf %44, %45 : vector<8x1xf32>
      %cst_24 = arith.constant 0.000000e+00 : f32
      %47 = vector.broadcast %cst_24 : f32 to vector<8x1xf32>
      %48 = arith.maximumf %46, %47 : vector<8x1xf32>
      %c0_25 = arith.constant 0 : index
      %c0_26 = arith.constant 0 : index
      %49 = vector.load %arg3[%c0_25, %c0_26] : memref<8x1xf32, #tpu.memory_space<vmem>>, vector<8x1xf32>
      %cst_27 = arith.constant 9.99999974E-6 : f32
      %50 = vector.broadcast %cst_27 : f32 to vector<8x1xf32>
      %51 = arith.addf %48, %50 : vector<8x1xf32>
      %52 = math.rsqrt %51 : vector<8x1xf32>
      %53 = arith.mulf %49, %52 : vector<8x1xf32>
      %c0_28 = arith.constant 0 : index
      %c0_29 = arith.constant 0 : index
      %54 = vector.load %arg4[%c0_28, %c0_29] : memref<8x1xf32, #tpu.memory_space<vmem>>, vector<8x1xf32>
      %55 = arith.mulf %42, %53 : vector<8x1xf32>
      %56 = arith.subf %54, %55 : vector<8x1xf32>
      %57 = tpu.concatenate %53, %53, %53, %53 in 0 : vector<8x1xf32>, vector<8x1xf32>, vector<8x1xf32>, vector<8x1xf32> -> vector<32x1xf32>
      %58 = tpu.concatenate %56, %56, %56, %56 in 0 : vector<8x1xf32>, vector<8x1xf32>, vector<8x1xf32>, vector<8x1xf32> -> vector<32x1xf32>
      %c0_30 = arith.constant 0 : index
      %c0_31 = arith.constant 0 : index
      %c0_32 = arith.constant 0 : index
      %59 = vector.load %arg5[%c0_30, %c0_31, %c0_32] : memref<2x32x256xf32, #tpu.memory_space<vmem>>, vector<1x32x256xf32>
      %60 = vector.shape_cast %59 : vector<1x32x256xf32> to vector<32x256xf32>
      %61 = vector.broadcast %57 : vector<32x1xf32> to vector<32x256xf32>
      %62 = arith.mulf %60, %61 : vector<32x256xf32>
      %63 = vector.broadcast %58 : vector<32x1xf32> to vector<32x256xf32>
      %64 = arith.addf %62, %63 : vector<32x256xf32>
      %cst_33 = arith.constant 0.000000e+00 : f32
      %65 = vector.broadcast %cst_33 : f32 to vector<32x256xf32>
      %66 = arith.maximumf %64, %65 : vector<32x256xf32>
      %c0_34 = arith.constant 0 : index
      %c0_35 = arith.constant 0 : index
      %c0_36 = arith.constant 0 : index
      %67 = vector.load %arg5[%c0_34, %c0_35, %c0_36] : memref<2x32x256xf32, #tpu.memory_space<vmem>>, vector<1x32x256xf32>
      %68 = vector.shape_cast %67 : vector<1x32x256xf32> to vector<32x256xf32>
      %69 = vector.shape_cast %66 : vector<32x256xf32> to vector<1x32x256xf32>
      tpu.vector_store %arg5[%c0_34, %c0_35, %c0_36], %69 {strides = array<i32>} : memref<2x32x256xf32, #tpu.memory_space<vmem>>, vector<1x32x256xf32>,
      %c1 = arith.constant 1 : index
      %c0_37 = arith.constant 0 : index
      %c0_38 = arith.constant 0 : index
      %70 = vector.load %arg5[%c1, %c0_37, %c0_38] : memref<2x32x256xf32, #tpu.memory_space<vmem>>, vector<1x32x256xf32>
      %71 = vector.shape_cast %70 : vector<1x32x256xf32> to vector<32x256xf32>
      %72 = vector.broadcast %57 : vector<32x1xf32> to vector<32x256xf32>
      %73 = arith.mulf %71, %72 : vector<32x256xf32>
      %74 = vector.broadcast %58 : vector<32x1xf32> to vector<32x256xf32>
      %75 = arith.addf %73, %74 : vector<32x256xf32>
      %cst_39 = arith.constant 0.000000e+00 : f32
      %76 = vector.broadcast %cst_39 : f32 to vector<32x256xf32>
      %77 = arith.maximumf %75, %76 : vector<32x256xf32>
      %c1_40 = arith.constant 1 : index
      %c0_41 = arith.constant 0 : index
      %c0_42 = arith.constant 0 : index
      %78 = vector.load %arg5[%c1_40, %c0_41, %c0_42] : memref<2x32x256xf32, #tpu.memory_space<vmem>>, vector<1x32x256xf32>
      %79 = vector.shape_cast %78 : vector<1x32x256xf32> to vector<32x256xf32>
      %80 = vector.shape_cast %77 : vector<32x256xf32> to vector<1x32x256xf32>
      tpu.vector_store %arg5[%c1_40, %c0_41, %c0_42], %80 {strides = array<i32>} : memref<2x32x256xf32, #tpu.memory_space<vmem>>, vector<1x32x256xf32>,
    } else {
    }
    return
  }
  func.func @transform_0(%arg0: i32) -> (i32, i32, i32) {
    %c0_i32 = arith.constant 0 : i32
    %c0_i32_0 = arith.constant 0 : i32
    %c0_i32_1 = arith.constant 0 : i32
    return %arg0, %c0_i32, %c0_i32_0 : i32, i32, i32
  }
  func.func @transform_1(%arg0: i32) -> (i32, i32) {
    %c0_i32 = arith.constant 0 : i32
    %c0_i32_0 = arith.constant 0 : i32
    %c0_i32_1 = arith.constant 0 : i32
    return %c0_i32, %c0_i32_0 : i32, i32
  }
  func.func @transform_2(%arg0: i32) -> (i32, i32) {
    %c0_i32 = arith.constant 0 : i32
    %c0_i32_0 = arith.constant 0 : i32
    %c0_i32_1 = arith.constant 0 : i32
    return %c0_i32, %c0_i32_0 : i32, i32
  }
  func.func @transform_3(%arg0: i32) -> (i32, i32) {
    %c0_i32 = arith.constant 0 : i32
    %c0_i32_0 = arith.constant 0 : i32
    %c0_i32_1 = arith.constant 0 : i32
    return %c0_i32, %c0_i32_0 : i32, i32
  }
  func.func @transform_4(%arg0: i32) -> (i32, i32, i32) {
    %c0_i32 = arith.constant 0 : i32
    %c0_i32_0 = arith.constant 0 : i32
    %c0_i32_1 = arith.constant 0 : i32
    %c0_i32_2 = arith.constant 0 : i32
    return %c0_i32, %c0_i32_0, %c0_i32_1 : i32, i32, i32
  }
}

</mosaic_0001>

<llo_original>
// kernel: up_conv_forward.1
$region0: #{up_conv_forward.1}
  #allocation0 [shape = 'u32[]', space=smem, size = 0x4, offset = 0x4, fixed_abs, tag = 'smem constant byte address 0x4 - core index']
  #allocation1 [shape = 'u32[144,128]{1,0:T(1,128)}', space=vmem, size = 0x12000, scoped, tag = 'internal scratch']
  #allocation2 [shape = 'f32[32,1]{1,0:T(8,128)}', space=vmem, size = 0x4000, scoped, tag = 'scratch operand']
  #allocation3 [shape = 'f32[32,1]{1,0:T(8,128)}', space=vmem, size = 0x4000, scoped, tag = 'scratch operand']
  %s0 = inlined_call_operand.vmem [shape: bf16[2,36,256], index: 0, kind: input, shape index: {}]
  %s1 = inlined_call_operand.vmem [shape: bf16[32,36], index: 1, kind: input, shape index: {}]
  %s2 = inlined_call_operand.vmem [shape: f32[8,1], index: 2, kind: input, shape index: {}]
  %s3 = inlined_call_operand.vmem [shape: f32[8,1], index: 3, kind: input, shape index: {}]
  %s4 = inlined_call_operand.vmem [shape: f32[2,32,256], index: 4, kind: output, shape index: {}]
  %s5 = sld [smem:[#allocation0]]
  $region57: #{up_conv_forward.1} parent=0
    _
  %s7 = ssub.s32 1, %s5
  %s8 = scalar_select 0, %s7, %s5
  loop: start=0, step=1, limit=4
  $region2: #{up_conv_forward.1} parent=0 // loop_pre_header
    _
  $region3: #{up_conv_forward.1} parent=0 // loop_header
    %s10 = sphi 0, %s14
    %p11 = scmp.ge.s32.totalorder %s10, 4
    %s20 = sphi 0, %s22
    %s23 = sphi 0, %s20
    %s24 = sphi 0, %s23
    %s40 = sphi 0, %s24
    %s44 = sphi 0, %s44
    %s46 = sphi 0, %s44
    %s47 = sphi 0, %s46
    %s61 = sphi 0, %s47
    %s65 = sphi 0, %s65
    %s67 = sphi 0, %s65
    %s68 = sphi 0, %s67
    %s82 = sphi 0, %s68
    %s86 = sphi 0, %s86
    %s88 = sphi 0, %s86
    %s89 = sphi 0, %s88
    %s103 = sphi 0, %s89
    %s107 = sphi 0, %s107
    %s109 = sphi 0, %s107
    %s110 = sphi 0, %s109
    %s124 = sphi 0, %s110
  $region4: #{up_conv_forward.1} parent=0 // loop_header_branch
    %13 = sbr.rel (%p11) target = $region8
  $region5: #{up_conv_forward.1} parent=0 // loop_body
    %s15 = ssub.s32 %s10, 1
    %s16 = ssub.s32 %s10, 2
    %s17 = sadd.s32 %s10, 1
    %s18 = ssub.s32 %s10, %s17
    %p19 = scmp.eq.s32.totalorder %s18, 0
    %s21 = sadd.s32 %s20, 1
    %s22 = scalar_select %p19, %s20, %s21
    %p25 = pneg %p19
    %p26 = scmp.eq.s32.totalorder %s10, 1
    %p27 = por %p25, %p26
    %p28 = scmp.ne.s32.totalorder %s20, %s23
    %p29 = scmp.eq.s32.totalorder %s10, 0
    %p30 = por %p28, %p29
    %p31 = scmp.ne.s32.totalorder %s20, %s23
    %p32 = scmp.eq.s32.totalorder %s15, 1
    %p33 = por %p31, %p32
    %p34 = scmp.ne.s32.totalorder %s23, %s24
    %p35 = scmp.eq.s32.totalorder %s15, 0
    %p36 = por %p34, %p35
    %p37 = scmp.ne.s32.totalorder %s23, %s24
    %p38 = scmp.eq.s32.totalorder %s16, 1
    %p39 = por %p37, %p38
    %p41 = scmp.ne.s32.totalorder %s24, %s40
    %p42 = scmp.eq.s32.totalorder %s16, 0
    %p43 = por %p41, %p42
    %s45 = sadd.s32 %s44, 1
    %p48 = scmp.eq.s32.totalorder %s10, 1
    %p49 = scmp.ne.s32.totalorder %s44, %s46
    %p50 = scmp.eq.s32.totalorder %s10, 0
    %p51 = por %p49, %p50
    %p52 = scmp.ne.s32.totalorder %s44, %s46
    %p53 = scmp.eq.s32.totalorder %s15, 1
    %p54 = por %p52, %p53
    %p55 = scmp.ne.s32.totalorder %s46, %s47
    %p56 = scmp.eq.s32.totalorder %s15, 0
    %p57 = por %p55, %p56
    %p58 = scmp.ne.s32.totalorder %s46, %s47
    %p59 = scmp.eq.s32.totalorder %s16, 1
    %p60 = por %p58, %p59
    %p62 = scmp.ne.s32.totalorder %s47, %s61
    %p63 = scmp.eq.s32.totalorder %s16, 0
    %p64 = por %p62, %p63
    %s66 = sadd.s32 %s65, 1
    %p69 = scmp.eq.s32.totalorder %s10, 1
    %p70 = scmp.ne.s32.totalorder %s65, %s67
    %p71 = scmp.eq.s32.totalorder %s10, 0
    %p72 = por %p70, %p71
    %p73 = scmp.ne.s32.totalorder %s65, %s67
    %p74 = scmp.eq.s32.totalorder %s15, 1
    %p75 = por %p73, %p74
    %p76 = scmp.ne.s32.totalorder %s67, %s68
    %p77 = scmp.eq.s32.totalorder %s15, 0
    %p78 = por %p76, %p77
    %p79 = scmp.ne.s32.totalorder %s67, %s68
    %p80 = scmp.eq.s32.totalorder %s16, 1
    %p81 = por %p79, %p80
    %p83 = scmp.ne.s32.totalorder %s68, %s82
    %p84 = scmp.eq.s32.totalorder %s16, 0
    %p85 = por %p83, %p84
    %s87 = sadd.s32 %s86, 1
    %p90 = scmp.eq.s32.totalorder %s10, 1
    %p91 = scmp.ne.s32.totalorder %s86, %s88
    %p92 = scmp.eq.s32.totalorder %s10, 0
    %p93 = por %p91, %p92
    %p94 = scmp.ne.s32.totalorder %s86, %s88
    %p95 = scmp.eq.s32.totalorder %s15, 1
    %p96 = por %p94, %p95
    %p97 = scmp.ne.s32.totalorder %s88, %s89
    %p98 = scmp.eq.s32.totalorder %s15, 0
    %p99 = por %p97, %p98
    %p100 = scmp.ne.s32.totalorder %s88, %s89
    %p101 = scmp.eq.s32.totalorder %s16, 1
    %p102 = por %p100, %p101
    %p104 = scmp.ne.s32.totalorder %s89, %s103
    %p105 = scmp.eq.s32.totalorder %s16, 0
    %p106 = por %p104, %p105
    %s108 = sadd.s32 %s107, 1
    %p111 = scmp.eq.s32.totalorder %s10, 1
    %p112 = scmp.ne.s32.totalorder %s107, %s109
    %p113 = scmp.eq.s32.totalorder %s10, 0
    %p114 = por %p112, %p113
    %p115 = scmp.ne.s32.totalorder %s107, %s109
    %p116 = scmp.eq.s32.totalorder %s15, 1
    %p117 = por %p115, %p116
    %p118 = scmp.ne.s32.totalorder %s109, %s110
    %p119 = scmp.eq.s32.totalorder %s15, 0
    %p120 = por %p118, %p119
    %p121 = scmp.ne.s32.totalorder %s109, %s110
    %p122 = scmp.eq.s32.totalorder %s16, 1
    %p123 = por %p121, %p122
    %p125 = scmp.ne.s32.totalorder %s110, %s124
    %p126 = scmp.eq.s32.totalorder %s16, 0
    %p127 = por %p125, %p126
    %p128 = scmp.le.s32.totalorder 1, %s10
    %p129 = scmp.lt.s32.totalorder %s10, 3
    %p130 = pnand %p128, %p129
    %p131 = pneg %p130
    // Predicated region
    $region9: #{up_conv_forward.1} parent=5 // pred_check
      _
    $region10: #{up_conv_forward.1} parent=5 // pred_check_branch
      %133 = sbr.rel (%p130) target = $region12
    $region11: #{up_conv_forward.1} parent=5 // pred_region
      %s134 = ssub.s32 %s10, 1
      // Predicated region
      $region13: #{up_conv_forward.1} parent=11 // pred_check
        %p135 = pneg %p57
      $region14: #{up_conv_forward.1} parent=11 // pred_check_branch
        %137 = sbr.rel (%p135) target = $region16
      $region15: #{up_conv_forward.1} parent=11 // pred_region
        _
      $region16: #{up_conv_forward.1} parent=11 // pred_fallthru
        _
      // Predicated region
      $region17: #{up_conv_forward.1} parent=11 // pred_check
        %p138 = pneg %p78
      $region18: #{up_conv_forward.1} parent=11 // pred_check_branch
        %140 = sbr.rel (%p138) target = $region20
      $region19: #{up_conv_forward.1} parent=11 // pred_region
        _
      $region20: #{up_conv_forward.1} parent=11 // pred_fallthru
        _
      // Predicated region
      $region21: #{up_conv_forward.1} parent=11 // pred_check
        %p141 = pneg %p99
      $region22: #{up_conv_forward.1} parent=11 // pred_check_branch
        %143 = sbr.rel (%p141) target = $region24
      $region23: #{up_conv_forward.1} parent=11 // pred_region
        _
      $region24: #{up_conv_forward.1} parent=11 // pred_fallthru
        _
    $region12: #{up_conv_forward.1} parent=5 // pred_fallthru
      _
    %p144 = scmp.lt.s32.totalorder %s10, 2
    // Predicated region
    $region25: #{up_conv_forward.1} parent=5 // pred_check
      %p145 = pneg %p144
    $region26: #{up_conv_forward.1} parent=5 // pred_check_branch
      %147 = sbr.rel (%p145) target = $region28
    $region27: #{up_conv_forward.1} parent=5 // pred_region
      // Predicated region
      $region29: #{up_conv_forward.1} parent=27 // pred_check
        %p148 = pneg %p30
      $region30: #{up_conv_forward.1} parent=27 // pred_check_branch
        %150 = sbr.rel (%p148) target = $region32
      $region31: #{up_conv_forward.1} parent=27 // pred_region
        %p151 = scmp.lt.s32.totalorder %s10, 1
        %s152 = scalar_select %p151, %s10, 1
        %s153 = smul.addr %s152, 10
        %s154 = smul.addr %s153, 4
        %s155 = scalar_lea.vmem %s0, %s154
      $region32: #{up_conv_forward.1} parent=27 // pred_fallthru
        _
    $region28: #{up_conv_forward.1} parent=5 // pred_fallthru
      _
    %p156 = scmp.le.s32.totalorder 1, %s10
    %p157 = scmp.lt.s32.totalorder %s10, 3
    %p158 = pnand %p156, %p157
    %p159 = pneg %p158
    // Predicated region
    $region33: #{up_conv_forward.1} parent=5 // pred_check
      _
    $region34: #{up_conv_forward.1} parent=5 // pred_check_branch
      %161 = sbr.rel (%p158) target = $region36
    $region35: #{up_conv_forward.1} parent=5 // pred_region
      %s162 = ssub.s32 %s10, 1
      %p163 = scmp.lt.s32.totalorder %s15, 1
      %s164 = scalar_select %p163, %s15, 1
      %s165 = smul.addr %s164, 10
      %s166 = smul.addr %s165, 4
      %s167 = scalar_lea.vmem %s0, %s166
      %p168 = pneg %p36
      %p169 = pneg %p33
      %p170 = pneg %p57
      %p171 = pneg %p54
      %p172 = pneg %p78
      %p173 = pneg %p75
      %p174 = pneg %p99
      %p175 = pneg %p96
      %p176 = pneg %p120
      %p177 = pneg %p117
      %p178 = scmp.lt.s32.totalorder %s15, 1
      %s179 = scalar_select %p178, %s15, 1
      %s180 = smul.addr %s179, 10
      %s181 = smul.addr %s180, 4
      %s182 = scalar_lea.vmem %s0, %s181
      %p184 = scmp.eq.s32.totalorder %s15, 0
      // Predicated region
      $region37: #{up_conv_forward.1} parent=35 // pred_check
        %p185 = pneg %p184
      $region38: #{up_conv_forward.1} parent=35 // pred_check_branch
        %187 = sbr.rel (%p185) target = $region40
      $region39: #{up_conv_forward.1} parent=35 // pred_region
        %vm188 = vcmask 7168
        %189 = vst.msk [vmem:[#allocation2] sm:$0xff] %vm188, 0.0
        %190 = vst.msk [vmem:[#allocation2 + $0x8] sm:$0xff] %vm188, 0.0
        %191 = vst.msk [vmem:[#allocation2 + $0x10] sm:$0xff] %vm188, 0.0
        %192 = vst.msk [vmem:[#allocation2 + $0x18] sm:$0xff] %vm188, 0.0
        %193 = vst.msk [vmem:[#allocation3] sm:$0xff] %vm188, 0.0
        %194 = vst.msk [vmem:[#allocation3 + $0x8] sm:$0xff] %vm188, 0.0
        %195 = vst.msk [vmem:[#allocation3 + $0x10] sm:$0xff] %vm188, 0.0
        %196 = vst.msk [vmem:[#allocation3 + $0x18] sm:$0xff] %vm188, 0.0
      $region40: #{up_conv_forward.1} parent=35 // pred_fallthru
        _
      %v197 = vld [vmem:[%s1] sm:$0xf]
      %v198 = vld [vmem:[%s1 + $0x4] sm:$0xf]
      %v199 = vld [vmem:[%s1 + $0x8] sm:$0xf]
      %v200 = vld [vmem:[%s1 + $0xc] sm:$0xf]
      %v201 = vld [vmem:[%s182] sm:$0xff]
      %v202 = vld [vmem:[%s182 + $0x8] sm:$0xff]
      %v203 = vld [vmem:[%s182 + $0x10] sm:$0xff]
      %v204 = vld [vmem:[%s182 + $0x18] sm:$0xff]
      %v205 = vld [vmem:[%s182 + $0x20] sm:$0x33]
      %v210 = vunpack.c.l.b16 %v197
      %v211 = vunpack.c.l.b16 %v198
      %v212 = vunpack.c.l.b16 %v199
      %v213 = vunpack.c.l.b16 %v200
      %v214 = vpack.c.b16 %v211, %v210
      %v215 = vpack.c.b16 %v213, %v212
      %v221 = vunpack.c.l.b16 %v201
      %v222 = vunpack.c.h.b16 %v201
      %v223 = vunpack.c.l.b16 %v202
      %v224 = vunpack.c.h.b16 %v202
      %v225 = vunpack.c.l.b16 %v203
      %v226 = vunpack.c.h.b16 %v203
      %v227 = vunpack.c.l.b16 %v204
      %v228 = vunpack.c.h.b16 %v204
      %v229 = vunpack.c.l.b16 %v205
      %v230 = vunpack.c.h.b16 %v205
      %v231 = vpack.c.b16 %v223, %v221
      %v232 = vpack.c.b16 %v224, %v222
      %v233 = vpack.c.b16 %v227, %v225
      %v234 = vpack.c.b16 %v228, %v226
      %v235 = vpack.c.b16 %v229, %v229
      %v236 = vpack.c.b16 %v230, %v230
      %vm241 = vcmask 293888
      %v243 = vsel %vm241, %v214, 0
      %v246 = vsel %vm241, %v215, 0
      %vm248 = vcmask 1041408
      %v250 = vsel %vm248, %v235, 0
      %v253 = vsel %vm248, %v236, 0
      %255 = vmatprep.subr.bf16.mxu0 0
      %256 = vmatpush1.bf16.msra.mxu0 0
      %257 = vmatprep.subr.bf16.mxu0 0
      %258 = vmatpush1.bf16.msra.mxu0 0
      %259 = vmatprep.subr.bf16.mxu0 0
      %260 = vmatpush1.bf16.msra.mxu0 0
      %261 = vmatprep.subr.bf16.mxu0 0
      %262 = vmatpush1.bf16.msra.mxu0 0
      %263 = vmatprep.subr.bf16.mxu0 0
      %264 = vmatpush1.bf16.msra.mxu0 0
      %265 = vmatprep.subr.bf16.mxu0 %v253
      %266 = vmatpush1.bf16.msra.mxu0 %v250
      %267 = vmatprep.subr.bf16.mxu0 %v234
      %268 = vmatpush1.bf16.msra.mxu0 %v233
      %269 = vmatprep.subr.bf16.mxu0 %v232
      %270 = vmatpush1.bf16.msra.mxu0 %v231
      %271 = vmatprep.subr.bf16.mxu0 0
      %272 = vmatpush2.bf16.msra.mxu0 0
      %273 = vmatprep.subr.bf16.mxu0 0
      %274 = vmatpush2.bf16.msra.mxu0 0
      %275 = vmatprep.subr.bf16.mxu0 0
      %276 = vmatpush2.bf16.msra.mxu0 0
      %277 = vmatprep.subr.bf16.mxu0 0
      %278 = vmatpush2.bf16.msra.mxu0 0
      %279 = vmatprep.subr.bf16.mxu0 0
      %280 = vmatpush2.bf16.msra.mxu0 0
      %281 = vmatprep.subr.bf16.mxu0 0
      %282 = vmatpush2.bf16.msra.mxu0 0
      %283 = vmatprep.subr.bf16.mxu0 0
      %284 = vmatpush2.bf16.msra.mxu0 0
      %285 = vmatprep.subr.bf16.mxu0 0
      %286 = vmatpush2.bf16.msra.mxu0 0
      %287 = vmatprep.mubr.bf16.mxu0 0
      %288 = vmatmul.mubr.bf16.gmra.mxu0 %v243
      %v289 = vpop.f32.mrf.mxu0
      %v290 = vadd.f32 0.0, %v289
      %v291 = vpop.f32.mrf.mxu0
      %v292 = vadd.f32 0.0, %v291
      %v293 = vpop.f32.mrf.mxu0
      %v294 = vadd.f32 0.0, %v293
      %v295 = vpop.f32.mrf.mxu0
      %v296 = vadd.f32 0.0, %v295
      %297 = vmatprep.mubr.bf16.mxu0 0
      %298 = vmatmul.mubr.bf16.gmra.mxu0 %v246
      %v299 = vpop.f32.mrf.mxu0
      %v300 = vadd.f32 0.0, %v299
      %v301 = vpop.f32.mrf.mxu0
      %v302 = vadd.f32 0.0, %v301
      %v303 = vpop.f32.mrf.mxu0
      %v304 = vadd.f32 0.0, %v303
      %v305 = vpop.f32.mrf.mxu0
      %v306 = vadd.f32 0.0, %v305
      %307 = vdwg.mxu0
      %s308 = smul.u32 %s15, 8
      %s309 = smul.addr %s308, 8
      %s310 = scalar_lea.vmem %s4, %s309
      %311 = vst [vmem:[%s310] sm:$0xff] %v290
      %312 = vst [vmem:[%s310 + $0x8] sm:$0xff] %v292
      %313 = vst [vmem:[%s310 + $0x10] sm:$0xff] %v294
      %314 = vst [vmem:[%s310 + $0x18] sm:$0xff] %v296
      %315 = vst [vmem:[%s310 + $0x20] sm:$0xff] %v300
      %316 = vst [vmem:[%s310 + $0x28] sm:$0xff] %v302
      %317 = vst [vmem:[%s310 + $0x30] sm:$0xff] %v304
      %318 = vst [vmem:[%s310 + $0x38] sm:$0xff] %v306
      %v319 = vld [vmem:[#allocation2] sm:$0xff]
      %v320 = vld [vmem:[#allocation2 + $0x8] sm:$0xff]
      %v321 = vld [vmem:[#allocation2 + $0x10] sm:$0xff]
      %v322 = vld [vmem:[#allocation2 + $0x18] sm:$0xff]
      %v323 = vadd.f32 %v290, %v292
      %324 = vadd.xlane.f32.xlu0 %v323
      %v325 = vpop.xlane.xlu0 %324
      %v326 = vadd.f32 %v294, %v296
      %327 = vadd.xlane.f32.xlu0 %v326
      %v328 = vpop.xlane.xlu0 %327
      %v329 = vadd.f32 %v300, %v302
      %330 = vadd.xlane.f32.xlu0 %v329
      %v331 = vpop.xlane.xlu0 %330
      %v332 = vadd.f32 %v304, %v306
      %333 = vadd.xlane.f32.xlu0 %v332
      %v334 = vpop.xlane.xlu0 %333
      %v335 = vadd.f32 %v319, %v325
      %v336 = vadd.f32 %v320, %v328
      %v337 = vadd.f32 %v321, %v331
      %v338 = vadd.f32 %v322, %v334
      %vm339 = vcmask 7168
      %340 = vst.msk [vmem:[#allocation2] sm:$0xff] %vm339, %v335
      %341 = vst.msk [vmem:[#allocation2 + $0x8] sm:$0xff] %vm339, %v336
      %342 = vst.msk [vmem:[#allocation2 + $0x10] sm:$0xff] %vm339, %v337
      %343 = vst.msk [vmem:[#allocation2 + $0x18] sm:$0xff] %vm339, %v338
      %v344 = vld [vmem:[#allocation3] sm:$0xff]
      %v345 = vld [vmem:[#allocation3 + $0x8] sm:$0xff]
      %v346 = vld [vmem:[#allocation3 + $0x10] sm:$0xff]
      %v347 = vld [vmem:[#allocation3 + $0x18] sm:$0xff]
      %v348 = vmul.f32 %v290, %v290
      %v349 = vmul.f32 %v292, %v292
      %v350 = vmul.f32 %v294, %v294
      %v351 = vmul.f32 %v296, %v296
      %v352 = vmul.f32 %v300, %v300
      %v353 = vmul.f32 %v302, %v302
      %v354 = vmul.f32 %v304, %v304
      %v355 = vmul.f32 %v306, %v306
      %v356 = vadd.f32 %v348, %v349
      %357 = vadd.xlane.f32.xlu0 %v356
      %v358 = vpop.xlane.xlu0 %357
      %v359 = vadd.f32 %v350, %v351
      %360 = vadd.xlane.f32.xlu0 %v359
      %v361 = vpop.xlane.xlu0 %360
      %v362 = vadd.f32 %v352, %v353
      %363 = vadd.xlane.f32.xlu0 %v362
      %v364 = vpop.xlane.xlu0 %363
      %v365 = vadd.f32 %v354, %v355
      %366 = vadd.xlane.f32.xlu0 %v365
      %v367 = vpop.xlane.xlu0 %366
      %v368 = vadd.f32 %v344, %v358
      %v369 = vadd.f32 %v345, %v361
      %v370 = vadd.f32 %v346, %v364
      %v371 = vadd.f32 %v347, %v367
      %372 = vst.msk [vmem:[#allocation3] sm:$0xff] %vm339, %v368
      %373 = vst.msk [vmem:[#allocation3 + $0x8] sm:$0xff] %vm339, %v369
      %374 = vst.msk [vmem:[#allocation3 + $0x10] sm:$0xff] %vm339, %v370
      %375 = vst.msk [vmem:[#allocation3 + $0x18] sm:$0xff] %vm339, %v371
      %p376 = scmp.eq.s32.totalorder %s15, 1
      // Predicated region
      $region41: #{up_conv_forward.1} parent=35 // pred_check
        %p377 = pneg %p376
      $region42: #{up_conv_forward.1} parent=35 // pred_check_branch
        %379 = sbr.rel (%p377) target = $region44
      $region43: #{up_conv_forward.1} parent=35 // pred_region
        %v380 = vld [vmem:[#allocation2] sm:$0xff]
        %v381 = vld [vmem:[#allocation2 + $0x8] sm:$0xff]
        %v382 = vld [vmem:[#allocation2 + $0x10] sm:$0xff]
        %v383 = vld [vmem:[#allocation2 + $0x18] sm:$0xff]
        %v384 = vld [vmem:[#allocation3] sm:$0xff]
        %v385 = vld [vmem:[#allocation3 + $0x8] sm:$0xff]
        %v386 = vld [vmem:[#allocation3 + $0x10] sm:$0xff]
        %v387 = vld [vmem:[#allocation3 + $0x18] sm:$0xff]
        %v388 = vadd.f32 %v380, %v381
        %v389 = vadd.f32 %v384, %v385
        %v390 = vadd.f32 %v388, %v382
        %v391 = vadd.f32 %v389, %v386
        %v392 = vadd.f32 %v390, %v383
        %v393 = vadd.f32 %v391, %v387
        %v394 = vrcp.pop 2048.0
        %v395 = vmul.f32 %v392, %v394
        %v396 = vmul.f32 %v393, %v394
        %v397 = vmul.f32 %v395, %v395
        %v398 = vsub.f32 %v396, %v397
        %v399 = vmax.f32 %v398, 0.0
        %v400 = vld [vmem:[%s2] sm:$0xff]
        %v401 = vadd.f32 %v399, 1e-05
        %v402 = vrsqrt.pop %v401
        %v403 = vmul.f32 %v400, %v402
        %v404 = vld [vmem:[%s3] sm:$0xff]
        %v405 = vmul.f32 %v395, %v403
        %v406 = vsub.f32 %v404, %v405
        %v407 = vld [vmem:[%s4] sm:$0xff]
        %v408 = vld [vmem:[%s4 + $0x8] sm:$0xff]
        %v409 = vld [vmem:[%s4 + $0x10] sm:$0xff]
        %v410 = vld [vmem:[%s4 + $0x18] sm:$0xff]
        %v411 = vld [vmem:[%s4 + $0x20] sm:$0xff]
        %v412 = vld [vmem:[%s4 + $0x28] sm:$0xff]
        %v413 = vld [vmem:[%s4 + $0x30] sm:$0xff]
        %v414 = vld [vmem:[%s4 + $0x38] sm:$0xff]
        %416 = vset.pattern.permute.xlu0 0
        %417 = vperm.xlu0 %416, %v403
        %v418 = vpop.permute.xlu0 %417
        %v420 = vmul.f32 %v407, %v418
        %v421 = vmul.f32 %v408, %v418
        %v422 = vmul.f32 %v409, %v418
        %v423 = vmul.f32 %v410, %v418
        %v424 = vmul.f32 %v411, %v418
        %v425 = vmul.f32 %v412, %v418
        %v426 = vmul.f32 %v413, %v418
        %v427 = vmul.f32 %v414, %v418
        %429 = vset.pattern.permute.xlu0 0
        %430 = vperm.xlu0 %429, %v406
        %v431 = vpop.permute.xlu0 %430
        %v433 = vadd.f32 %v420, %v431
        %v434 = vadd.f32 %v421, %v431
        %v435 = vadd.f32 %v422, %v431
        %v436 = vadd.f32 %v423, %v431
        %v437 = vadd.f32 %v424, %v431
        %v438 = vadd.f32 %v425, %v431
        %v439 = vadd.f32 %v426, %v431
        %v440 = vadd.f32 %v427, %v431
        %v441 = vmax.f32 %v433, 0.0
        %v442 = vmax.f32 %v434, 0.0
        %v443 = vmax.f32 %v435, 0.0
        %v444 = vmax.f32 %v436, 0.0
        %v445 = vmax.f32 %v437, 0.0
        %v446 = vmax.f32 %v438, 0.0
        %v447 = vmax.f32 %v439, 0.0
        %v448 = vmax.f32 %v440, 0.0
        %449 = vst [vmem:[%s4] sm:$0xff] %v441
        %450 = vst [vmem:[%s4 + $0x8] sm:$0xff] %v442
        %451 = vst [vmem:[%s4 + $0x10] sm:$0xff] %v443
        %452 = vst [vmem:[%s4 + $0x18] sm:$0xff] %v444
        %453 = vst [vmem:[%s4 + $0x20] sm:$0xff] %v445
        %454 = vst [vmem:[%s4 + $0x28] sm:$0xff] %v446
        %455 = vst [vmem:[%s4 + $0x30] sm:$0xff] %v447
        %456 = vst [vmem:[%s4 + $0x38] sm:$0xff] %v448
        %s457 = scalar_lea.vmem %s4, 64
        %v458 = vld [vmem:[%s457] sm:$0xff]
        %v459 = vld [vmem:[%s457 + $0x8] sm:$0xff]
        %v460 = vld [vmem:[%s457 + $0x10] sm:$0xff]
        %v461 = vld [vmem:[%s457 + $0x18] sm:$0xff]
        %v462 = vld [vmem:[%s457 + $0x20] sm:$0xff]
        %v463 = vld [vmem:[%s457 + $0x28] sm:$0xff]
        %v464 = vld [vmem:[%s457 + $0x30] sm:$0xff]
        %v465 = vld [vmem:[%s457 + $0x38] sm:$0xff]
        %v466 = vmul.f32 %v458, %v418
        %v467 = vmul.f32 %v459, %v418
        %v468 = vmul.f32 %v460, %v418
        %v469 = vmul.f32 %v461, %v418
        %v470 = vmul.f32 %v462, %v418
        %v471 = vmul.f32 %v463, %v418
        %v472 = vmul.f32 %v464, %v418
        %v473 = vmul.f32 %v465, %v418
        %v474 = vadd.f32 %v466, %v431
        %v475 = vadd.f32 %v467, %v431
        %v476 = vadd.f32 %v468, %v431
        %v477 = vadd.f32 %v469, %v431
        %v478 = vadd.f32 %v470, %v431
        %v479 = vadd.f32 %v471, %v431
        %v480 = vadd.f32 %v472, %v431
        %v481 = vadd.f32 %v473, %v431
        %v482 = vmax.f32 %v474, 0.0
        %v483 = vmax.f32 %v475, 0.0
        %v484 = vmax.f32 %v476, 0.0
        %v485 = vmax.f32 %v477, 0.0
        %v486 = vmax.f32 %v478, 0.0
        %v487 = vmax.f32 %v479, 0.0
        %v488 = vmax.f32 %v480, 0.0
        %v489 = vmax.f32 %v481, 0.0
        %490 = vst [vmem:[%s457] sm:$0xff] %v482
        %491 = vst [vmem:[%s457 + $0x8] sm:$0xff] %v483
        %492 = vst [vmem:[%s457 + $0x10] sm:$0xff] %v484
        %493 = vst [vmem:[%s457 + $0x18] sm:$0xff] %v485
        %494 = vst [vmem:[%s457 + $0x20] sm:$0xff] %v486
        %495 = vst [vmem:[%s457 + $0x28] sm:$0xff] %v487
        %496 = vst [vmem:[%s457 + $0x30] sm:$0xff] %v488
        %497 = vst [vmem:[%s457 + $0x38] sm:$0xff] %v489
      $region44: #{up_conv_forward.1} parent=35 // pred_fallthru
        _
      // Predicated region
      $region45: #{up_conv_forward.1} parent=35 // pred_check
        %p498 = pneg %p117
      $region46: #{up_conv_forward.1} parent=35 // pred_check_branch
        %500 = sbr.rel (%p498) target = $region48
      $region47: #{up_conv_forward.1} parent=35 // pred_region
        _
      $region48: #{up_conv_forward.1} parent=35 // pred_fallthru
        _
      // Predicated region
      $region49: #{up_conv_forward.1} parent=35 // pred_check
        %p501 = pneg %p117
      $region50: #{up_conv_forward.1} parent=35 // pred_check_branch
        %503 = sbr.rel (%p501) target = $region52
      $region51: #{up_conv_forward.1} parent=35 // pred_region
        _
      $region52: #{up_conv_forward.1} parent=35 // pred_fallthru
        _
    $region36: #{up_conv_forward.1} parent=5 // pred_fallthru
      _
    %p504 = scmp.le.s32.totalorder 2, %s10
    // Predicated region
    $region53: #{up_conv_forward.1} parent=5 // pred_check
      %p505 = pneg %p504
    $region54: #{up_conv_forward.1} parent=5 // pred_check_branch
      %507 = sbr.rel (%p505) target = $region56
    $region55: #{up_conv_forward.1} parent=5 // pred_region
      %s508 = ssub.s32 %s10, 2
    $region56: #{up_conv_forward.1} parent=5 // pred_fallthru
      _
  $region6: #{up_conv_forward.1} parent=0 // loop_footer
    %s14 = sadd.s32 1, %s10
  $region7: #{up_conv_forward.1} parent=0 // loop_footer_branch
    %9 = sbr.rel target = $region3
  $region8: #{up_conv_forward.1} parent=0 // loop_exit
    _

</llo_original>
